<compile_context>
chip_gen: v7x
topology: tpu7x:2x2x1
jax: 0.10.0
libtpu: 0.0.40
codegen_flags: <defaults>
</compile_context>

<pallas_src>
import functools

import jax
import jax.numpy as jnp
from jax.experimental import pallas as pl
from jax.experimental.pallas import tpu as pltpu


def _round_up(v, m):
    return ((v + m - 1) // m) * m


def _block_diag(w, r):
    """w: [g, d] -> r-way block-diagonal [r*g, r*d] (exact; identity for r==1)."""
    if r == 1:
        return w
    g, d = w.shape
    eye = jnp.eye(r, dtype=w.dtype)
    return (eye[:, None, :, None] * w[None, :, None, :]).reshape(r * g, r * d)


def _pick_tile_rows(rows, bytes_per_row, *, budget_bytes, min_steps):
    """Rows per grid step: as big as the double-buffered VMEM budget allows,
    capped so the grid keeps >= min_steps steps (megacore sharding / overlap)."""
    if rows <= 8:
        return rows                               # single full block (legal: == full dim)
    tile = budget_bytes // (2 * bytes_per_row)    # 2x: Pallas double-buffers each stream
    tile = max(8, (tile // 8) * 8)                # f32 sublane constraint
    cap = _round_up(pl.cdiv(rows, min_steps), 8)  # keep >= min_steps grid steps
    tile = min(tile, cap, _round_up(rows, 8))
    return max(8, (tile // 8) * 8)


def _bbox_pe_kernel(x_ref, xin_ref, yin_ref, pg_ref,
                    wx_ref, wy_ref, wp_ref, b_ref, o_ref):
    """One row tile: out = x + x_in@Wx + y_in@Wy + page@Wp + (bx+by+bp)."""
    acc = x_ref[...].astype(jnp.float32)
    acc = acc + jnp.dot(xin_ref[...], wx_ref[...], preferred_element_type=jnp.float32)
    acc = acc + jnp.dot(yin_ref[...], wy_ref[...], preferred_element_type=jnp.float32)
    acc = acc + jnp.dot(pg_ref[...], wp_ref[...], preferred_element_type=jnp.float32)
    acc = acc + b_ref[...]
    o_ref[...] = acc.astype(o_ref.dtype)


@functools.partial(jax.jit, static_argnames=("vmem_budget_bytes", "min_grid_steps"))
def bbox_positional_encoding(x, x_in, y_in, page_in,
                             wx, bx, wy, by, wp, bp,
                             *, vmem_budget_bytes=10 << 20, min_grid_steps=2):
    """x: [B,S,D]; x_in: [B,S,Gw]; y_in: [B,S,Gh]; page_in: [B,S,P].
    wx: [Gw,D], wy: [Gh,D], wp: [P,D] (transposed vs. torch); biases: [D].
    Returns [B,S,D] in x.dtype."""
    B, S, D = x.shape
    M = B * S
    gw, gh, mp = x_in.shape[-1], y_in.shape[-1], page_in.shape[-1]

    # Lane-folding factor: pack r consecutive rows into one 128-lane row.
    # Only when the reshape is free (no padding / no HBM copy ever).
    r = 128 // D if (D < 128 and 128 % D == 0) else 1
    if r > 1 and M % r != 0:
        r = 1
    rows = M // r
    d_eff, gw_eff, gh_eff, mp_eff = r * D, r * gw, r * gh, r * mp

    # Free row-major reshapes (merge adjacent dims only).
    x2 = x.reshape(rows, d_eff)
    xin2 = x_in.reshape(rows, gw_eff)
    yin2 = y_in.reshape(rows, gh_eff)
    pg2 = page_in.reshape(rows, mp_eff)

    # Exact block-diagonal weight expansion (f32, kept resident in VMEM).
    wx_e = _block_diag(wx.astype(jnp.float32), r)
    wy_e = _block_diag(wy.astype(jnp.float32), r)
    wp_e = _block_diag(wp.astype(jnp.float32), r)
    b_e = jnp.tile((bx.astype(jnp.float32) + by.astype(jnp.float32)
                    + bp.astype(jnp.float32)), r).reshape(1, d_eff)

    bytes_per_row = (2 * d_eff * x.dtype.itemsize          # x read + out write
                     + gw_eff * x_in.dtype.itemsize
                     + gh_eff * y_in.dtype.itemsize
                     + mp_eff * page_in.dtype.itemsize)
    tile = _pick_tile_rows(rows, bytes_per_row,
                           budget_bytes=vmem_budget_bytes,
                           min_steps=min_grid_steps)
    grid = (pl.cdiv(rows, tile),)                           # ragged last block OK

    out2 = pl.pallas_call(
        _bbox_pe_kernel,
        out_shape=jax.ShapeDtypeStruct((rows, d_eff), x.dtype),
        grid_spec=pltpu.PrefetchScalarGridSpec(
            num_scalar_prefetch=0,
            grid=grid,
            in_specs=[
                pl.BlockSpec((tile, d_eff), lambda i: (i, 0)),     # x rows
                pl.BlockSpec((tile, gw_eff), lambda i: (i, 0)),    # x_in rows
                pl.BlockSpec((tile, gh_eff), lambda i: (i, 0)),    # y_in rows
                pl.BlockSpec((tile, mp_eff), lambda i: (i, 0)),    # page rows
                pl.BlockSpec((gw_eff, d_eff), lambda i: (0, 0)),   # Wx (resident)
                pl.BlockSpec((gh_eff, d_eff), lambda i: (0, 0)),   # Wy (resident)
                pl.BlockSpec((mp_eff, d_eff), lambda i: (0, 0)),   # Wp (resident)
                pl.BlockSpec((1, d_eff), lambda i: (0, 0)),        # bias (resident)
            ],
            out_specs=pl.BlockSpec((tile, d_eff), lambda i: (i, 0)),
        ),
        compiler_params=pltpu.CompilerParams(
            dimension_semantics=("parallel",)),
    )(x2, xin2, yin2, pg2, wx_e, wy_e, wp_e, b_e)

    return out2.reshape(B, S, D)


def _init_linear(key, in_features, out_features):
    """Mimics torch.nn.Linear default init; returns W^T [in, out] and bias [out]."""
    kw, kb = jax.random.split(key)
    bound = 1.0 / jnp.sqrt(in_features)
    w = jax.random.uniform(kw, (in_features, out_features),
                           minval=-bound, maxval=bound, dtype=jnp.float32)
    b = jax.random.uniform(kb, (out_features,),
                           minval=-bound, maxval=bound, dtype=jnp.float32)
    return w, b


if __name__ == "__main__":
    d_hid = 32
    positional_grid_shape = (8, 16)   # (grid_h, grid_w)
    max_pages = 4
    B, S = 2, 8

    key = jax.random.PRNGKey(0)
    k_x, k_xin, k_yin, k_pg, k_wx, k_wy, k_wp = jax.random.split(key, 7)

    wx, bx = _init_linear(k_wx, positional_grid_shape[1], d_hid)
    wy, by = _init_linear(k_wy, positional_grid_shape[0], d_hid)
    wp, bp = _init_linear(k_wp, max_pages, d_hid)

    x = jax.random.normal(k_x, (B, S, d_hid), dtype=jnp.float32)
    x_ids = jax.random.randint(k_xin, (B, S), 0, positional_grid_shape[1])
    y_ids = jax.random.randint(k_yin, (B, S), 0, positional_grid_shape[0])
    p_ids = jax.random.randint(k_pg, (B, S), 0, max_pages)
    x_in = jax.nn.one_hot(x_ids, positional_grid_shape[1], dtype=jnp.float32)
    y_in = jax.nn.one_hot(y_ids, positional_grid_shape[0], dtype=jnp.float32)
    page_in = jax.nn.one_hot(p_ids, max_pages, dtype=jnp.float32)

    # Lane-folded path (M = 16 divisible by r = 128//32 = 4).
    out = bbox_positional_encoding(x, x_in, y_in, page_in,
                                   wx, bx, wy, by, wp, bp)
    jax.block_until_ready(out)
    ref = x + x_in @ wx + bx + y_in @ wy + by + page_in @ wp + bp
    assert out.shape == (B, S, d_hid)
    assert jnp.allclose(out, ref, atol=1e-5, rtol=1e-5)

    # Fallback path: M = 3*37 = 111 (not divisible by 4) -> r = 1, ragged last block.
    B2, S2 = 3, 37
    x_b = jax.random.normal(k_x, (B2, S2, d_hid), dtype=jnp.float32)
    xi_b = jax.nn.one_hot(
        jax.random.randint(k_xin, (B2, S2), 0, positional_grid_shape[1]),
        positional_grid_shape[1], dtype=jnp.float32)
    yi_b = jax.nn.one_hot(
        jax.random.randint(k_yin, (B2, S2), 0, positional_grid_shape[0]),
        positional_grid_shape[0], dtype=jnp.float32)
    pg_b = jax.nn.one_hot(
        jax.random.randint(k_pg, (B2, S2), 0, max_pages),
        max_pages, dtype=jnp.float32)
    out_b = bbox_positional_encoding(x_b, xi_b, yi_b, pg_b,
                                     wx, bx, wy, by, wp, bp)
    jax.block_until_ready(out_b)
    ref_b = x_b + xi_b @ wx + bx + yi_b @ wy + by + pg_b @ wp + bp
    assert jnp.allclose(out_b, ref_b, atol=1e-5, rtol=1e-5)

    print("KERNEL_OK")
</pallas_src>

<mosaic_0001>
module attributes {stable_mosaic.version = 11 : i64} {
  func.func @_bbox_pe_kernel(%arg0: i32, %arg1: memref<4x128xf32, #tpu.memory_space<vmem>>, %arg2: memref<4x64xf32, #tpu.memory_space<vmem>>, %arg3: memref<4x32xf32, #tpu.memory_space<vmem>>, %arg4: memref<4x16xf32, #tpu.memory_space<vmem>>, %arg5: memref<64x128xf32, #tpu.memory_space<vmem>>, %arg6: memref<32x128xf32, #tpu.memory_space<vmem>>, %arg7: memref<16x128xf32, #tpu.memory_space<vmem>>, %arg8: memref<1x128xf32, #tpu.memory_space<vmem>>, %arg9: memref<4x128xf32, #tpu.memory_space<vmem>>) attributes {dimension_semantics = [#tpu.dimension_semantics<parallel>], iteration_bounds = array<i64: 1>, scalar_prefetch = 0 : i64, scratch_operands = 0 : i64, tpu.core_type = #tpu.core_type<tc>, window_params = [{transform_indices = @transform_0, window_bounds = array<i64: 4, 128>}, {transform_indices = @transform_1, window_bounds = array<i64: 4, 64>}, {transform_indices = @transform_2, window_bounds = array<i64: 4, 32>}, {transform_indices = @transform_3, window_bounds = array<i64: 4, 16>}, {pipeline_mode = #tpu.pipeline_mode<synchronous>, transform_indices = @transform_4, window_bounds = array<i64: 64, 128>}, {pipeline_mode = #tpu.pipeline_mode<synchronous>, transform_indices = @transform_5, window_bounds = array<i64: 32, 128>}, {pipeline_mode = #tpu.pipeline_mode<synchronous>, transform_indices = @transform_6, window_bounds = array<i64: 16, 128>}, {pipeline_mode = #tpu.pipeline_mode<synchronous>, transform_indices = @transform_7, window_bounds = array<i64: 1, 128>}, {transform_indices = @transform_8, window_bounds = array<i64: 4, 128>}]} {
    %c0 = arith.constant 0 : index
    %c0_0 = arith.constant 0 : index
    %0 = vector.load %arg1[%c0, %c0_0] : memref<4x128xf32, #tpu.memory_space<vmem>>, vector<4x128xf32>
    %c0_1 = arith.constant 0 : index
    %c0_2 = arith.constant 0 : index
    %1 = vector.load %arg2[%c0_1, %c0_2] : memref<4x64xf32, #tpu.memory_space<vmem>>, vector<4x64xf32>
    %c0_3 = arith.constant 0 : index
    %c0_4 = arith.constant 0 : index
    %2 = vector.load %arg5[%c0_3, %c0_4] : memref<64x128xf32, #tpu.memory_space<vmem>>, vector<64x128xf32>
    %cst = arith.constant dense<0.000000e+00> : vector<4x128xf32>
    %3 = tpu.matmul %1, %2, %cst {dimension_numbers = #tpu.dot_dimension_numbers<[1], [0], [0], [1], [0, 0, 1, 1], [], []>} : vector<4x64xf32>, vector<64x128xf32>, vector<4x128xf32> -> vector<4x128xf32>
    %4 = arith.addf %0, %3 : vector<4x128xf32>
    %c0_5 = arith.constant 0 : index
    %c0_6 = arith.constant 0 : index
    %5 = vector.load %arg3[%c0_5, %c0_6] : memref<4x32xf32, #tpu.memory_space<vmem>>, vector<4x32xf32>
    %c0_7 = arith.constant 0 : index
    %c0_8 = arith.constant 0 : index
    %6 = vector.load %arg6[%c0_7, %c0_8] : memref<32x128xf32, #tpu.memory_space<vmem>>, vector<32x128xf32>
    %cst_9 = arith.constant dense<0.000000e+00> : vector<4x128xf32>
    %7 = tpu.matmul %5, %6, %cst_9 {dimension_numbers = #tpu.dot_dimension_numbers<[1], [0], [0], [1], [0, 0, 1, 1], [], []>} : vector<4x32xf32>, vector<32x128xf32>, vector<4x128xf32> -> vector<4x128xf32>
    %8 = arith.addf %4, %7 : vector<4x128xf32>
    %c0_10 = arith.constant 0 : index
    %c0_11 = arith.constant 0 : index
    %9 = vector.load %arg4[%c0_10, %c0_11] : memref<4x16xf32, #tpu.memory_space<vmem>>, vector<4x16xf32>
    %c0_12 = arith.constant 0 : index
    %c0_13 = arith.constant 0 : index
    %10 = vector.load %arg7[%c0_12, %c0_13] : memref<16x128xf32, #tpu.memory_space<vmem>>, vector<16x128xf32>
    %cst_14 = arith.constant dense<0.000000e+00> : vector<4x128xf32>
    %11 = tpu.matmul %9, %10, %cst_14 {dimension_numbers = #tpu.dot_dimension_numbers<[1], [0], [0], [1], [0, 0, 1, 1], [], []>} : vector<4x16xf32>, vector<16x128xf32>, vector<4x128xf32> -> vector<4x128xf32>
    %12 = arith.addf %8, %11 : vector<4x128xf32>
    %c0_15 = arith.constant 0 : index
    %c0_16 = arith.constant 0 : index
    %13 = vector.load %arg8[%c0_15, %c0_16] : memref<1x128xf32, #tpu.memory_space<vmem>>, vector<1x128xf32>
    %14 = vector.broadcast %13 : vector<1x128xf32> to vector<4x128xf32>
    %15 = arith.addf %12, %14 : vector<4x128xf32>
    %c0_17 = arith.constant 0 : index
    %c0_18 = arith.constant 0 : index
    %16 = vector.load %arg9[%c0_17, %c0_18] : memref<4x128xf32, #tpu.memory_space<vmem>>, vector<4x128xf32>
    tpu.vector_store %arg9[%c0_17, %c0_18], %15 {strides = array<i32>} : memref<4x128xf32, #tpu.memory_space<vmem>>, vector<4x128xf32>,
    return
  }
  func.func @transform_0(%arg0: i32) -> (i32, i32) {
    %c0_i32 = arith.constant 0 : i32
    %c0_i32_0 = arith.constant 0 : i32
    return %arg0, %c0_i32 : i32, i32
  }
  func.func @transform_1(%arg0: i32) -> (i32, i32) {
    %c0_i32 = arith.constant 0 : i32
    %c0_i32_0 = arith.constant 0 : i32
    return %arg0, %c0_i32 : i32, i32
  }
  func.func @transform_2(%arg0: i32) -> (i32, i32) {
    %c0_i32 = arith.constant 0 : i32
    %c0_i32_0 = arith.constant 0 : i32
    return %arg0, %c0_i32 : i32, i32
  }
  func.func @transform_3(%arg0: i32) -> (i32, i32) {
    %c0_i32 = arith.constant 0 : i32
    %c0_i32_0 = arith.constant 0 : i32
    return %arg0, %c0_i32 : i32, i32
  }
  func.func @transform_4(%arg0: i32) -> (i32, i32) {
    %c0_i32 = arith.constant 0 : i32
    %c0_i32_0 = arith.constant 0 : i32
    %c0_i32_1 = arith.constant 0 : i32
    return %c0_i32, %c0_i32_0 : i32, i32
  }
  func.func @transform_5(%arg0: i32) -> (i32, i32) {
    %c0_i32 = arith.constant 0 : i32
    %c0_i32_0 = arith.constant 0 : i32
    %c0_i32_1 = arith.constant 0 : i32
    return %c0_i32, %c0_i32_0 : i32, i32
  }
  func.func @transform_6(%arg0: i32) -> (i32, i32) {
    %c0_i32 = arith.constant 0 : i32
    %c0_i32_0 = arith.constant 0 : i32
    %c0_i32_1 = arith.constant 0 : i32
    return %c0_i32, %c0_i32_0 : i32, i32
  }
  func.func @transform_7(%arg0: i32) -> (i32, i32) {
    %c0_i32 = arith.constant 0 : i32
    %c0_i32_0 = arith.constant 0 : i32
    %c0_i32_1 = arith.constant 0 : i32
    return %c0_i32, %c0_i32_0 : i32, i32
  }
  func.func @transform_8(%arg0: i32) -> (i32, i32) {
    %c0_i32 = arith.constant 0 : i32
    %c0_i32_0 = arith.constant 0 : i32
    return %arg0, %c0_i32 : i32, i32
  }
}

</mosaic_0001>

<llo_original>
// kernel: tile.8
$region0: #{tile.8}
  #allocation0 [shape = 's32[1]{0}', space=sflag, size = 0x4, scoped, tag = 'scoped memory for tile.8']
  %s0 = inlined_call_operand.vmem [shape: f32[32], index: 0, kind: input, shape index: {}]
  %s1 = inlined_call_operand.vmem [shape: f32[4,32], index: 1, kind: output, shape index: {}]
  // Predicated region
  $region2: #{tile.8} parent=0 // pred_check
    _
  $region3: #{tile.8} parent=0 // pred_check_branch
    %3 = sbr.rel (0) target = $region5
  $region4: #{tile.8} parent=0 // pred_region
    _
  $region5: #{tile.8} parent=0 // pred_fallthru
    _
  %v4 = vld [vmem:[%s0] ss:$0 sm:$0xff]
  %5 = vst [vmem:[%s1] sm:$0xf] %v4

// kernel: tile.9
$region0: #{tile.9}
  %s0 = inlined_call_operand.vmem [shape: f32[4,32], index: 0, kind: input, shape index: {}]
  %s1 = inlined_call_operand.vmem [shape: f32[1,128], index: 1, kind: output, shape index: {}]
  $region1: #{tile.9} parent=0
    #allocation0 [shape = 'u8[4096]{0}', space=vmem, size = 0x1000, scoped, tag = 'scoped mem for output reshape']
    #allocation1 [shape = 'u8[4096]{0}', space=vmem, size = 0x1000, scoped, tag = 'scoped mem for input reshape']
    %s3 = sshllo.u32 0, 4
    %v4 = vld [vmem:[%s0] sm:%s3]
    %5 = vst [vmem:[#allocation1] sm:%s3] %v4
    %v6 = vld [vmem:[#allocation1] sm:$0x1]
    %vm7 = vcmask 261120
    %8 = vst.msk [vmem:[#allocation0] sm:$0x1] %vm7, %v6
    %s9 = scalar_lea.vmem [#allocation1], 3
    %v10 = vld [vmem:[%s9] sm:$0x1]
    %11 = vrot.lane.b32.xlu0 %v10, 96
    %v12 = vpop.permute.xlu0 %11
    %vm13 = vcmask 1048320
    %14 = vst.msk [vmem:[#allocation0] sm:$0x1] %vm13, %v12
    %s15 = scalar_lea.vmem [#allocation1], 2
    %v16 = vld [vmem:[%s15] sm:$0x1]
    %17 = vrot.lane.b32.xlu0 %v16, 64
    %v18 = vpop.permute.xlu0 %17
    %vm19 = vcmask 785920
    %20 = vst.msk [vmem:[#allocation0] sm:$0x1] %vm19, %v18
    %s21 = scalar_lea.vmem [#allocation1], 1
    %v22 = vld [vmem:[%s21] sm:$0x1]
    %23 = vrot.lane.b32.xlu0 %v22, 32
    %v24 = vpop.permute.xlu0 %23
    %vm25 = vcmask 523520
    %26 = vst.msk [vmem:[#allocation0] sm:$0x1] %vm25, %v24
    %s28 = sshllo.u32 0, 1
    %v30 = vld [vmem:[#allocation0] sm:%s28]
    %s31 = sshllo.u32 0, 1
    %32 = vst [vmem:[%s1] sm:%s31] %v30

// kernel: bbox_positional_encoding.1
$region0: #{bbox_positional_encoding.1}
  #allocation0 [shape = 'u32[]', space=smem, size = 0x4, offset = 0x4, fixed_abs, tag = 'smem constant byte address 0x4 - core index']
  #allocation1 [shape = 'u32[144,128]{1,0:T(1,128)}', space=vmem, size = 0x12000, scoped, tag = 'internal scratch']
  %s0 = inlined_call_operand.vmem [shape: f32[4,128], index: 0, kind: input, shape index: {}]
  %s1 = inlined_call_operand.vmem [shape: f32[4,64], index: 1, kind: input, shape index: {}]
  %s2 = inlined_call_operand.vmem [shape: f32[4,32], index: 2, kind: input, shape index: {}]
  %s3 = inlined_call_operand.vmem [shape: f32[4,16], index: 3, kind: input, shape index: {}]
  %s4 = inlined_call_operand.vmem [shape: f32[64,128], index: 4, kind: input, shape index: {}]
  %s5 = inlined_call_operand.vmem [shape: f32[32,128], index: 5, kind: input, shape index: {}]
  %s6 = inlined_call_operand.vmem [shape: f32[16,128], index: 6, kind: input, shape index: {}]
  %s7 = inlined_call_operand.vmem [shape: f32[1,128], index: 7, kind: input, shape index: {}]
  %s8 = inlined_call_operand.vmem [shape: f32[4,128], index: 8, kind: output, shape index: {}]
  %s9 = sld [smem:[#allocation0]]
  $region42: #{bbox_positional_encoding.1} parent=0
    _
  %s11 = ssub.s32 1, %s9
  %s12 = scalar_select 0, %s11, %s9
  // Predicated region
  $region2: #{bbox_positional_encoding.1} parent=0 // pred_check
    _
  $region3: #{bbox_positional_encoding.1} parent=0 // pred_check_branch
    %14 = sbr.rel (0) target = $region5
  $region4: #{bbox_positional_encoding.1} parent=0 // pred_region
    _
  $region5: #{bbox_positional_encoding.1} parent=0 // pred_fallthru
    _
  // Predicated region
  $region6: #{bbox_positional_encoding.1} parent=0 // pred_check
    _
  $region7: #{bbox_positional_encoding.1} parent=0 // pred_check_branch
    %16 = sbr.rel (0) target = $region9
  $region8: #{bbox_positional_encoding.1} parent=0 // pred_region
    _
  $region9: #{bbox_positional_encoding.1} parent=0 // pred_fallthru
    _
  // Predicated region
  $region10: #{bbox_positional_encoding.1} parent=0 // pred_check
    _
  $region11: #{bbox_positional_encoding.1} parent=0 // pred_check_branch
    %18 = sbr.rel (0) target = $region13
  $region12: #{bbox_positional_encoding.1} parent=0 // pred_region
    _
  $region13: #{bbox_positional_encoding.1} parent=0 // pred_fallthru
    _
  // Predicated region
  $region14: #{bbox_positional_encoding.1} parent=0 // pred_check
    _
  $region15: #{bbox_positional_encoding.1} parent=0 // pred_check_branch
    %20 = sbr.rel (0) target = $region17
  $region16: #{bbox_positional_encoding.1} parent=0 // pred_region
    _
  $region17: #{bbox_positional_encoding.1} parent=0 // pred_fallthru
    _
  // Predicated region
  $region18: #{bbox_positional_encoding.1} parent=0 // pred_check
    _
  $region19: #{bbox_positional_encoding.1} parent=0 // pred_check_branch
    %22 = sbr.rel (0) target = $region21
  $region20: #{bbox_positional_encoding.1} parent=0 // pred_region
    _
  $region21: #{bbox_positional_encoding.1} parent=0 // pred_fallthru
    _
  // Predicated region
  $region22: #{bbox_positional_encoding.1} parent=0 // pred_check
    _
  $region23: #{bbox_positional_encoding.1} parent=0 // pred_check_branch
    %24 = sbr.rel (0) target = $region25
  $region24: #{bbox_positional_encoding.1} parent=0 // pred_region
    _
  $region25: #{bbox_positional_encoding.1} parent=0 // pred_fallthru
    _
  // Predicated region
  $region26: #{bbox_positional_encoding.1} parent=0 // pred_check
    _
  $region27: #{bbox_positional_encoding.1} parent=0 // pred_check_branch
    %26 = sbr.rel (0) target = $region29
  $region28: #{bbox_positional_encoding.1} parent=0 // pred_region
    _
  $region29: #{bbox_positional_encoding.1} parent=0 // pred_fallthru
    _
  // Predicated region
  $region30: #{bbox_positional_encoding.1} parent=0 // pred_check
    _
  $region31: #{bbox_positional_encoding.1} parent=0 // pred_check_branch
    %28 = sbr.rel (0) target = $region33
  $region32: #{bbox_positional_encoding.1} parent=0 // pred_region
    _
  $region33: #{bbox_positional_encoding.1} parent=0 // pred_fallthru
    _
  %v29 = vld [vmem:[%s0] sm:$0xf]
  %v30 = vld [vmem:[%s1] sm:$0xf]
  %v31 = vld [vmem:[%s4] sm:$0xff]
  %v32 = vld [vmem:[%s4 + $0x8] sm:$0xff]
  %v33 = vld [vmem:[%s4 + $0x10] sm:$0xff]
  %v34 = vld [vmem:[%s4 + $0x18] sm:$0xff]
  %v35 = vld [vmem:[%s4 + $0x20] sm:$0xff]
  %v36 = vld [vmem:[%s4 + $0x28] sm:$0xff]
  %v37 = vld [vmem:[%s4 + $0x30] sm:$0xff]
  %v38 = vld [vmem:[%s4 + $0x38] sm:$0xff]
  %vm39 = vcmask 523264
  %v41 = vsel %vm39, %v30, 0
  %43 = vmatprep.subr.mxu0 0.0
  %44 = vmatpush1.msra.mxu0 %v31
  %45 = vmatprep.subr.mxu0 0.0
  %46 = vmatpush1.msra.mxu0 %v32
  %47 = vmatprep.subr.mxu0 0.0
  %48 = vmatpush1.msra.mxu0 %v33
  %49 = vmatprep.subr.mxu0 0.0
  %50 = vmatpush1.msra.mxu0 %v34
  %51 = vmatprep.subr.mxu0 0.0
  %52 = vmatpush1.msra.mxu0 %v35
  %53 = vmatprep.subr.mxu0 0.0
  %54 = vmatpush1.msra.mxu0 %v36
  %55 = vmatprep.subr.mxu0 0.0
  %56 = vmatpush1.msra.mxu0 %v37
  %57 = vmatprep.subr.mxu0 0.0
  %58 = vmatpush1.msra.mxu0 %v38
  %59 = vmatprep.subr.mxu0 0.0
  %60 = vmatpush1.msra.mxu0 0.0
  %61 = vmatprep.subr.mxu0 0.0
  %62 = vmatpush1.msra.mxu0 0.0
  %63 = vmatprep.subr.mxu0 0.0
  %64 = vmatpush1.msra.mxu0 0.0
  %65 = vmatprep.subr.mxu0 0.0
  %66 = vmatpush1.msra.mxu0 0.0
  %67 = vmatprep.subr.mxu0 0.0
  %68 = vmatpush1.msra.mxu0 0.0
  %69 = vmatprep.subr.mxu0 0.0
  %70 = vmatpush1.msra.mxu0 0.0
  %71 = vmatprep.subr.mxu0 0.0
  %72 = vmatpush1.msra.mxu0 0.0
  %73 = vmatprep.subr.mxu0 0.0
  %74 = vmatpush1.msra.mxu0 0.0
  %75 = vmatprep.subr.mxu0 0.0
  %76 = vmatpush1.msra.mxu0 0.0
  %77 = vmatprep.subr.mxu0 0.0
  %78 = vmatpush1.msra.mxu0 0.0
  %79 = vmatprep.subr.mxu0 0.0
  %80 = vmatpush1.msra.mxu0 0.0
  %81 = vmatprep.subr.mxu0 0.0
  %82 = vmatpush1.msra.mxu0 0.0
  %83 = vmatprep.subr.mxu0 0.0
  %84 = vmatpush1.msra.mxu0 0.0
  %85 = vmatprep.subr.mxu0 0.0
  %86 = vmatpush1.msra.mxu0 0.0
  %87 = vmatprep.subr.mxu0 0.0
  %88 = vmatpush1.msra.mxu0 0.0
  %89 = vmatprep.subr.mxu0 0.0
  %90 = vmatpush1.msra.mxu0 0.0
  %91 = vmatprep.subr.mxu0 0.0
  %92 = vmatpush1.msra.mxu0 0.0
  %93 = vmatprep.subr.mxu0 0.0
  %94 = vmatpush1.msra.mxu0 0.0
  %95 = vmatprep.subr.mxu0 0.0
  %96 = vmatpush1.msra.mxu0 0.0
  %97 = vmatprep.subr.mxu0 0.0
  %98 = vmatpush1.msra.mxu0 0.0
  %99 = vmatprep.subr.mxu0 0.0
  %100 = vmatpush1.msra.mxu0 0.0
  %101 = vmatprep.subr.mxu0 0.0
  %102 = vmatpush1.msra.mxu0 0.0
  %103 = vmatprep.subr.mxu0 0.0
  %104 = vmatpush1.msra.mxu0 0.0
  %105 = vmatprep.subr.mxu0 0.0
  %106 = vmatpush1.msra.mxu0 0.0
  %107 = vmatprep.mubr.f32.mxu0 0.0
  %108 = vmatmul.mubr.f32.gmra.mrb[0].mxu0 %v41
  %v109 = vpop.f32.mrb[0].mxu0
  %v110 = vadd.f32 0.0, %v109
  %v111 = vpop.f32.mrb[0].mxu0
  %112 = vdwg.mxu0
  %v113 = vadd.f32 %v29, %v110
  %v114 = vld [vmem:[%s2] sm:$0xf]
  %v115 = vld [vmem:[%s5] sm:$0xff]
  %v116 = vld [vmem:[%s5 + $0x8] sm:$0xff]
  %v117 = vld [vmem:[%s5 + $0x10] sm:$0xff]
  %v118 = vld [vmem:[%s5 + $0x18] sm:$0xff]
  %vm119 = vcmask 261120
  %v121 = vsel %vm119, %v114, 0
  %123 = vmatprep.subr.mxu0 0.0
  %124 = vmatpush1.msra.mxu0 %v115
  %125 = vmatprep.subr.mxu0 0.0
  %126 = vmatpush1.msra.mxu0 %v116
  %127 = vmatprep.subr.mxu0 0.0
  %128 = vmatpush1.msra.mxu0 %v117
  %129 = vmatprep.subr.mxu0 0.0
  %130 = vmatpush1.msra.mxu0 %v118
  %131 = vmatprep.subr.mxu0 0.0
  %132 = vmatpush1.msra.mxu0 0.0
  %133 = vmatprep.subr.mxu0 0.0
  %134 = vmatpush1.msra.mxu0 0.0
  %135 = vmatprep.subr.mxu0 0.0
  %136 = vmatpush1.msra.mxu0 0.0
  %137 = vmatprep.subr.mxu0 0.0
  %138 = vmatpush1.msra.mxu0 0.0
  %139 = vmatprep.subr.mxu0 0.0
  %140 = vmatpush1.msra.mxu0 0.0
  %141 = vmatprep.subr.mxu0 0.0
  %142 = vmatpush1.msra.mxu0 0.0
  %143 = vmatprep.subr.mxu0 0.0
  %144 = vmatpush1.msra.mxu0 0.0
  %145 = vmatprep.subr.mxu0 0.0
  %146 = vmatpush1.msra.mxu0 0.0
  %147 = vmatprep.subr.mxu0 0.0
  %148 = vmatpush1.msra.mxu0 0.0
  %149 = vmatprep.subr.mxu0 0.0
  %150 = vmatpush1.msra.mxu0 0.0
  %151 = vmatprep.subr.mxu0 0.0
  %152 = vmatpush1.msra.mxu0 0.0
  %153 = vmatprep.subr.mxu0 0.0
  %154 = vmatpush1.msra.mxu0 0.0
  %155 = vmatprep.subr.mxu0 0.0
  %156 = vmatpush1.msra.mxu0 0.0
  %157 = vmatprep.subr.mxu0 0.0
  %158 = vmatpush1.msra.mxu0 0.0
  %159 = vmatprep.subr.mxu0 0.0
  %160 = vmatpush1.msra.mxu0 0.0
  %161 = vmatprep.subr.mxu0 0.0
  %162 = vmatpush1.msra.mxu0 0.0
  %163 = vmatprep.subr.mxu0 0.0
  %164 = vmatpush1.msra.mxu0 0.0
  %165 = vmatprep.subr.mxu0 0.0
  %166 = vmatpush1.msra.mxu0 0.0
  %167 = vmatprep.subr.mxu0 0.0
  %168 = vmatpush1.msra.mxu0 0.0
  %169 = vmatprep.subr.mxu0 0.0
  %170 = vmatpush1.msra.mxu0 0.0
  %171 = vmatprep.subr.mxu0 0.0
  %172 = vmatpush1.msra.mxu0 0.0
  %173 = vmatprep.subr.mxu0 0.0
  %174 = vmatpush1.msra.mxu0 0.0
  %175 = vmatprep.subr.mxu0 0.0
  %176 = vmatpush1.msra.mxu0 0.0
  %177 = vmatprep.subr.mxu0 0.0
  %178 = vmatpush1.msra.mxu0 0.0
  %179 = vmatprep.subr.mxu0 0.0
  %180 = vmatpush1.msra.mxu0 0.0
  %181 = vmatprep.subr.mxu0 0.0
  %182 = vmatpush1.msra.mxu0 0.0
  %183 = vmatprep.subr.mxu0 0.0
  %184 = vmatpush1.msra.mxu0 0.0
  %185 = vmatprep.subr.mxu0 0.0
  %186 = vmatpush1.msra.mxu0 0.0
  %187 = vmatprep.mubr.f32.mxu0 0.0
  %188 = vmatmul.mubr.f32.gmra.mrb[0].mxu0 %v121
  %v189 = vpop.f32.mrb[0].mxu0
  %v190 = vadd.f32 0.0, %v189
  %v191 = vpop.f32.mrb[0].mxu0
  %192 = vdwg.mxu0
  %v193 = vadd.f32 %v113, %v190
  %v194 = vld [vmem:[%s3] sm:$0xf]
  %v195 = vld [vmem:[%s6] sm:$0xff]
  %v196 = vld [vmem:[%s6 + $0x8] sm:$0xff]
  %vm197 = vcmask 130048
  %v199 = vsel %vm197, %v194, 0
  %201 = vmatprep.subr.mxu0 0.0
  %202 = vmatpush1.msra.mxu0 %v195
  %203 = vmatprep.subr.mxu0 0.0
  %204 = vmatpush1.msra.mxu0 %v196
  %205 = vmatprep.subr.mxu0 0.0
  %206 = vmatpush1.msra.mxu0 0.0
  %207 = vmatprep.subr.mxu0 0.0
  %208 = vmatpush1.msra.mxu0 0.0
  %209 = vmatprep.subr.mxu0 0.0
  %210 = vmatpush1.msra.mxu0 0.0
  %211 = vmatprep.subr.mxu0 0.0
  %212 = vmatpush1.msra.mxu0 0.0
  %213 = vmatprep.subr.mxu0 0.0
  %214 = vmatpush1.msra.mxu0 0.0
  %215 = vmatprep.subr.mxu0 0.0
  %216 = vmatpush1.msra.mxu0 0.0
  %217 = vmatprep.subr.mxu0 0.0
  %218 = vmatpush1.msra.mxu0 0.0
  %219 = vmatprep.subr.mxu0 0.0
  %220 = vmatpush1.msra.mxu0 0.0
  %221 = vmatprep.subr.mxu0 0.0
  %222 = vmatpush1.msra.mxu0 0.0
  %223 = vmatprep.subr.mxu0 0.0
  %224 = vmatpush1.msra.mxu0 0.0
  %225 = vmatprep.subr.mxu0 0.0
  %226 = vmatpush1.msra.mxu0 0.0
  %227 = vmatprep.subr.mxu0 0.0
  %228 = vmatpush1.msra.mxu0 0.0
  %229 = vmatprep.subr.mxu0 0.0
  %230 = vmatpush1.msra.mxu0 0.0
  %231 = vmatprep.subr.mxu0 0.0
  %232 = vmatpush1.msra.mxu0 0.0
  %233 = vmatprep.subr.mxu0 0.0
  %234 = vmatpush1.msra.mxu0 0.0
  %235 = vmatprep.subr.mxu0 0.0
  %236 = vmatpush1.msra.mxu0 0.0
  %237 = vmatprep.subr.mxu0 0.0
  %238 = vmatpush1.msra.mxu0 0.0
  %239 = vmatprep.subr.mxu0 0.0
  %240 = vmatpush1.msra.mxu0 0.0
  %241 = vmatprep.subr.mxu0 0.0
  %242 = vmatpush1.msra.mxu0 0.0
  %243 = vmatprep.subr.mxu0 0.0
  %244 = vmatpush1.msra.mxu0 0.0
  %245 = vmatprep.subr.mxu0 0.0
  %246 = vmatpush1.msra.mxu0 0.0
  %247 = vmatprep.subr.mxu0 0.0
  %248 = vmatpush1.msra.mxu0 0.0
  %249 = vmatprep.subr.mxu0 0.0
  %250 = vmatpush1.msra.mxu0 0.0
  %251 = vmatprep.subr.mxu0 0.0
  %252 = vmatpush1.msra.mxu0 0.0
  %253 = vmatprep.subr.mxu0 0.0
  %254 = vmatpush1.msra.mxu0 0.0
  %255 = vmatprep.subr.mxu0 0.0
  %256 = vmatpush1.msra.mxu0 0.0
  %257 = vmatprep.subr.mxu0 0.0
  %258 = vmatpush1.msra.mxu0 0.0
  %259 = vmatprep.subr.mxu0 0.0
  %260 = vmatpush1.msra.mxu0 0.0
  %261 = vmatprep.subr.mxu0 0.0
  %262 = vmatpush1.msra.mxu0 0.0
  %263 = vmatprep.subr.mxu0 0.0
  %264 = vmatpush1.msra.mxu0 0.0
  %265 = vmatprep.mubr.f32.mxu0 0.0
  %266 = vmatmul.mubr.f32.gmra.mrb[0].mxu0 %v199
  %v267 = vpop.f32.mrb[0].mxu0
  %v268 = vadd.f32 0.0, %v267
  %v269 = vpop.f32.mrb[0].mxu0
  %270 = vdwg.mxu0
  %v271 = vadd.f32 %v193, %v268
  %v272 = vld [vmem:[%s7] sm:$0x1]
  %v274 = vlaneseq
  %v275 = vshrl.u32 %v274, 7
  %v276 = vsub.s32 0, %v275
  %v277 = vrot.slane %v272, %v276
  %v279 = vadd.f32 %v271, %v277
  %280 = vst [vmem:[%s8] sm:$0xf] %v279
  // Predicated region
  $region34: #{bbox_positional_encoding.1} parent=0 // pred_check
    _
  $region35: #{bbox_positional_encoding.1} parent=0 // pred_check_branch
    %282 = sbr.rel (0) target = $region37
  $region36: #{bbox_positional_encoding.1} parent=0 // pred_region
    _
  $region37: #{bbox_positional_encoding.1} parent=0 // pred_fallthru
    _
  // Predicated region
  $region38: #{bbox_positional_encoding.1} parent=0 // pred_check
    _
  $region39: #{bbox_positional_encoding.1} parent=0 // pred_check_branch
    %284 = sbr.rel (0) target = $region41
  $region40: #{bbox_positional_encoding.1} parent=0 // pred_region
    _
  $region41: #{bbox_positional_encoding.1} parent=0 // pred_fallthru
    _

</llo_original>
